<compile_context>
chip_gen: v7x
topology: tpu7x:2x2x1
jax: 0.10.0
libtpu: 0.0.40
codegen_flags: <defaults>
</compile_context>

<pallas_src>
import functools

import jax
import jax.numpy as jnp
from jax.experimental import pallas as pl
from jax.experimental.pallas import tpu as pltpu


# ------------------------------ kernel body ----------------------------------


def _linear_kernel(x_ref, w_ref, b_ref, o_ref):
    # x_ref: (tile_m, K)   w_ref: (K, n_blk)   b_ref: (1, n_blk)
    # o_ref: (tile_m, n_blk)
    acc = jnp.dot(x_ref[...], w_ref[...], preferred_element_type=jnp.float32)
    o_ref[...] = (acc + b_ref[...].astype(jnp.float32)).astype(o_ref.dtype)


# ------------------------------ sizing helpers --------------------------------

_LANE = 128
_TILE_M_CAP = 4096                 # rows; keeps per-step latency reasonable
_INTERNAL_SCRATCH = 2 * 1024 * 1024  # reserve for Mosaic internal scratch
_PALLAS_MIN_MACS = 1 << 26         # below this, XLA's fused GEMM wins


def _round_up(x, m):
    return ((x + m - 1) // m) * m


@functools.lru_cache(maxsize=None)
def _vmem_budget_and_limit():
    """Generation-aware VMEM budget (~60%) and scoped limit (~80%)."""
    cap = 64 * 1024 * 1024  # conservative fallback (v7x per-TC VMEM)
    try:
        cap = int(pltpu.get_tpu_info().vmem_capacity_bytes)
    except Exception:
        pass
    budget = int(cap * 0.60)
    limit = int(cap * 0.80)
    return budget, limit


def _pick_tile_m(m, k, n_blk, itemsize, budget, tile_m_cap=None):
    """Largest M tile fitting the budget; 0 if the resident slab alone doesn't fit."""
    sublane = 16 if itemsize < 4 else 8
    # Resident (double-buffered) weight + bias blocks.
    resident = 2 * (k * n_blk + n_blk) * itemsize
    # Per-row cost: streamed x tile + out tile (double-buffered) + f32 accumulator.
    per_row = 2 * k * itemsize + 2 * n_blk * itemsize + n_blk * 4
    avail = budget - resident - _INTERNAL_SCRATCH
    if avail <= 0:
        return 0
    max_rows = avail // per_row
    if max_rows < sublane:
        return 0
    cap = min(int(max_rows), _TILE_M_CAP)
    if tile_m_cap is not None:
        cap = min(cap, max(int(tile_m_cap), sublane))
    if m <= cap:
        return _round_up(m, sublane)
    if cap >= _LANE:
        return (cap // _LANE) * _LANE
    return (cap // sublane) * sublane


def _pick_tile_n(n, k, itemsize, budget):
    """256-aligned N tile for the large-N path (v6e/v7x MXU width); 0 if nothing fits."""
    n_ceil = _round_up(n, _LANE)
    for t in (512, 256, 128):
        if t > n_ceil:
            continue
        resident = 2 * (k * t + t) * itemsize
        per_row = 2 * k * itemsize + 2 * t * itemsize + t * 4
        if resident + _INTERNAL_SCRATCH + _LANE * per_row <= budget:
            return t
    return 0


# ------------------------------ public wrapper --------------------------------


def time_distributed_linear(input_seq, weight, bias, *, force_pallas=False,
                            tile_m_cap=None):
    """Apply a Linear layer across every (batch, time) slice.

    input_seq: (B, T, F_in)  (arrays with ndim <= 2 are returned unchanged,
               exactly like the PyTorch TimeDistributed module).
    weight:    (F_in, F_out) -- already transposed vs PyTorch's (F_out, F_in)
    bias:      (F_out,)
    """
    if input_seq.ndim <= 2:
        return input_seq

    B, T = input_seq.shape[0], input_seq.shape[1]
    feat = input_seq.shape[2:]
    assert len(feat) == 1, "TimeDistributed(nn.Linear) expects (B, T, F) input"
    K = feat[0]
    N = weight.shape[1]
    M = B * T

    x2d = input_seq.reshape(M, K)          # fold (B, T) -> B*T (metadata only)
    dtype = input_seq.dtype
    itemsize = jnp.dtype(dtype).itemsize

    def _xla_fallback():
        return (x2d @ weight + bias).astype(dtype).reshape(B, T, N)

    # Tiny problems: pallas_call fixed overhead dwarfs the matmul.
    if not force_pallas and M * K * N < _PALLAS_MIN_MACS:
        return _xla_fallback()

    budget, vmem_limit = _vmem_budget_and_limit()
    b2d = bias.reshape(1, N)

    # ---- preferred path: 1-D grid over M, full (K, N) weight slab resident ----
    tile_m = _pick_tile_m(M, K, N, itemsize, budget, tile_m_cap)
    if tile_m > 0:
        gm = pl.cdiv(M, tile_m)
        cost = pl.CostEstimate(
            flops=2 * M * K * N,
            bytes_accessed=(M * K + K * N + N + M * N) * itemsize,
            transcendentals=0,
        )
        out2d = pl.pallas_call(
            _linear_kernel,
            out_shape=jax.ShapeDtypeStruct((M, N), dtype),
            grid=(gm,),
            in_specs=[
                pl.BlockSpec((tile_m, K), lambda i: (i, 0)),  # streamed activations
                pl.BlockSpec((K, N), lambda i: (0, 0)),       # weight: DMA'd once, resident
                pl.BlockSpec((1, N), lambda i: (0, 0)),       # bias: DMA'd once, resident
            ],
            out_specs=pl.BlockSpec((tile_m, N), lambda i: (i, 0)),
            compiler_params=pltpu.CompilerParams(
                dimension_semantics=("parallel",),
                vmem_limit_bytes=vmem_limit,
            ),
            cost_estimate=cost,
        )(x2d, weight, b2d)
        return out2d.reshape(B, T, N)

    # ---- large-N fallback: 2-D grid, weight tiled along N ----------------------
    tile_n = _pick_tile_n(N, K, itemsize, budget)
    if tile_n == 0:
        # TODO(synk): K-reduction grid axis (see module header) instead of bailing.
        return _xla_fallback()
    tile_m2 = _pick_tile_m(M, K, tile_n, itemsize, budget, tile_m_cap)
    if tile_m2 == 0:
        return _xla_fallback()

    gm = pl.cdiv(M, tile_m2)
    gn = pl.cdiv(N, tile_n)

    # Pick the grid order that re-streams the cheaper operand.
    w_refetch = gm * K * N     # N innermost: weight re-streamed once per M tile
    x_refetch = gn * M * K     # M innermost: activations re-streamed once per N tile
    if w_refetch <= x_refetch:
        grid = (gm, gn)
        x_spec = pl.BlockSpec((tile_m2, K), lambda i, j: (i, 0))
        w_spec = pl.BlockSpec((K, tile_n), lambda i, j: (0, j))
        b_spec = pl.BlockSpec((1, tile_n), lambda i, j: (0, j))
        o_spec = pl.BlockSpec((tile_m2, tile_n), lambda i, j: (i, j))
        streamed = M * K + w_refetch
    else:
        grid = (gn, gm)
        x_spec = pl.BlockSpec((tile_m2, K), lambda j, i: (i, 0))
        w_spec = pl.BlockSpec((K, tile_n), lambda j, i: (0, j))
        b_spec = pl.BlockSpec((1, tile_n), lambda j, i: (0, j))
        o_spec = pl.BlockSpec((tile_m2, tile_n), lambda j, i: (i, j))
        streamed = x_refetch + K * N

    cost = pl.CostEstimate(
        flops=2 * M * K * N,
        bytes_accessed=(streamed + N + M * N) * itemsize,
        transcendentals=0,
    )
    out2d = pl.pallas_call(
        _linear_kernel,
        out_shape=jax.ShapeDtypeStruct((M, N), dtype),
        grid=grid,
        in_specs=[x_spec, w_spec, b_spec],
        out_specs=o_spec,
        compiler_params=pltpu.CompilerParams(
            dimension_semantics=("parallel", "parallel"),
            vmem_limit_bytes=vmem_limit,
        ),
        cost_estimate=cost,
    )(x2d, weight, b2d)
    return out2d.reshape(B, T, N)


# ------------------------------ self-test --------------------------------------

if __name__ == "__main__":
    key = jax.random.PRNGKey(0)
    kx, kw, kb, kx2, kw2, kb2 = jax.random.split(key, 6)

    # --- small shapes consistent with TimeDistributed(nn.Linear) ----------------
    B, T, F_IN, F_OUT = 2, 8, 32, 32
    x = jax.random.normal(kx, (B, T, F_IN), dtype=jnp.float32)
    w = jax.random.normal(kw, (F_IN, F_OUT), dtype=jnp.float32) * 0.05
    b = jax.random.normal(kb, (F_OUT,), dtype=jnp.float32) * 0.05

    out = time_distributed_linear(x, w, b, force_pallas=True)
    out = jax.block_until_ready(out)
    ref = (x.reshape(-1, F_IN) @ w + b).reshape(B, T, F_OUT)
    assert out.shape == (B, T, F_OUT)
    assert jnp.allclose(out, ref, atol=1e-4, rtol=1e-4)

    # --- moderate case: multi-step M grid with ragged M / non-128 K and N -------
    B2, T2, F_IN2, F_OUT2 = 3, 250, 200, 192
    x_l = jax.random.normal(kx2, (B2, T2, F_IN2), dtype=jnp.float32)
    w_l = jax.random.normal(kw2, (F_IN2, F_OUT2), dtype=jnp.float32) * 0.05
    b_l = jax.random.normal(kb2, (F_OUT2,), dtype=jnp.float32) * 0.05

    # tile_m_cap=256 forces gm=3 with a ragged last tile (750 rows), exercising
    # the unpadded edge-clamping path and the resident weight slab.
    out_l = time_distributed_linear(x_l, w_l, b_l, force_pallas=True, tile_m_cap=256)
    out_l = jax.block_until_ready(out_l)
    ref_l = (x_l.reshape(-1, F_IN2) @ w_l + b_l).reshape(B2, T2, F_OUT2)
    assert out_l.shape == (B2, T2, F_OUT2)
    assert jnp.allclose(out_l, ref_l, atol=2e-3, rtol=2e-3)

    # --- passthrough branch (ndim <= 2), exactly like the PyTorch module --------
    x_2d = jax.random.normal(kx, (B, F_IN), dtype=jnp.float32)
    assert time_distributed_linear(x_2d, w, b) is x_2d

    print("KERNEL_OK")
</pallas_src>

<mosaic_0001>
module attributes {stable_mosaic.version = 11 : i64} {
  func.func @_linear_kernel(%arg0: i32, %arg1: memref<16x32xf32, #tpu.memory_space<vmem>>, %arg2: memref<32x32xf32, #tpu.memory_space<vmem>>, %arg3: memref<1x32xf32, #tpu.memory_space<vmem>>, %arg4: memref<16x32xf32, #tpu.memory_space<vmem>>) attributes {dimension_semantics = [#tpu.dimension_semantics<parallel>], iteration_bounds = array<i64: 1>, scalar_prefetch = 0 : i64, scratch_operands = 0 : i64, tpu.core_type = #tpu.core_type<tc>, window_params = [{transform_indices = @transform_0, window_bounds = array<i64: 16, 32>}, {pipeline_mode = #tpu.pipeline_mode<synchronous>, transform_indices = @transform_1, window_bounds = array<i64: 32, 32>}, {pipeline_mode = #tpu.pipeline_mode<synchronous>, transform_indices = @transform_2, window_bounds = array<i64: 1, 32>}, {transform_indices = @transform_3, window_bounds = array<i64: 16, 32>}]} {
    %c0 = arith.constant 0 : index
    %c0_0 = arith.constant 0 : index
    %0 = vector.load %arg1[%c0, %c0_0] : memref<16x32xf32, #tpu.memory_space<vmem>>, vector<16x32xf32>
    %c0_1 = arith.constant 0 : index
    %c0_2 = arith.constant 0 : index
    %1 = vector.load %arg2[%c0_1, %c0_2] : memref<32x32xf32, #tpu.memory_space<vmem>>, vector<32x32xf32>
    %cst = arith.constant dense<0.000000e+00> : vector<16x32xf32>
    %2 = tpu.matmul %0, %1, %cst {dimension_numbers = #tpu.dot_dimension_numbers<[1], [0], [0], [1], [0, 0, 1, 1], [], []>} : vector<16x32xf32>, vector<32x32xf32>, vector<16x32xf32> -> vector<16x32xf32>
    %c0_3 = arith.constant 0 : index
    %c0_4 = arith.constant 0 : index
    %3 = vector.load %arg3[%c0_3, %c0_4] : memref<1x32xf32, #tpu.memory_space<vmem>>, vector<1x32xf32>
    %4 = vector.broadcast %3 : vector<1x32xf32> to vector<16x32xf32>
    %5 = arith.addf %2, %4 : vector<16x32xf32>
    %c0_5 = arith.constant 0 : index
    %c0_6 = arith.constant 0 : index
    %6 = vector.load %arg4[%c0_5, %c0_6] : memref<16x32xf32, #tpu.memory_space<vmem>>, vector<16x32xf32>
    tpu.vector_store %arg4[%c0_5, %c0_6], %5 {strides = array<i32>} : memref<16x32xf32, #tpu.memory_space<vmem>>, vector<16x32xf32>,
    return
  }
  func.func @transform_0(%arg0: i32) -> (i32, i32) {
    %c0_i32 = arith.constant 0 : i32
    %c0_i32_0 = arith.constant 0 : i32
    return %arg0, %c0_i32 : i32, i32
  }
  func.func @transform_1(%arg0: i32) -> (i32, i32) {
    %c0_i32 = arith.constant 0 : i32
    %c0_i32_0 = arith.constant 0 : i32
    %c0_i32_1 = arith.constant 0 : i32
    return %c0_i32, %c0_i32_0 : i32, i32
  }
  func.func @transform_2(%arg0: i32) -> (i32, i32) {
    %c0_i32 = arith.constant 0 : i32
    %c0_i32_0 = arith.constant 0 : i32
    %c0_i32_1 = arith.constant 0 : i32
    return %c0_i32, %c0_i32_0 : i32, i32
  }
  func.func @transform_3(%arg0: i32) -> (i32, i32) {
    %c0_i32 = arith.constant 0 : i32
    %c0_i32_0 = arith.constant 0 : i32
    return %arg0, %c0_i32 : i32, i32
  }
}

</mosaic_0001>

<llo_original>
// kernel: tpu_custom_call.1
$region0: #{tpu_custom_call.1}
  #allocation0 [shape = 'u32[]', space=smem, size = 0x4, offset = 0x4, fixed_abs, tag = 'smem constant byte address 0x4 - core index']
  #allocation1 [shape = 'u32[144,128]{1,0:T(1,128)}', space=vmem, size = 0x12000, scoped, tag = 'internal scratch']
  %s0 = inlined_call_operand.hbm [shape: f32[16,32], index: 0, kind: input, shape index: {}]
  %s1 = inlined_call_operand.hbm [shape: f32[32,32], index: 1, kind: input, shape index: {}]
  %s2 = inlined_call_operand.vmem [shape: f32[1,32], index: 2, kind: input, shape index: {}]
  %s3 = inlined_call_operand.hbm [shape: f32[16,32], index: 3, kind: output, shape index: {}]
  %s4 = sld [smem:[#allocation0]]
  $region30: #{tpu_custom_call.1} parent=0
    _
  %s6 = ssub.s32 1, %s4
  %s7 = scalar_select 0, %s6, %s4
  $region1: #{tpu_custom_call.1} parent=0
    #allocation2 [shape = 'u8[8192]{0}', space=vmem, size = 0x2000, scoped, tag = 'input window, operand 0, single buffered']
    #allocation3 [shape = 's32[1]{0}', space=sflag, size = 0x4, scoped, tag = 'scoped memory for tpu_custom_call.1']
    #allocation4 [shape = 's32[1]{0}', space=sflag, size = 0x4, scoped, tag = 'scoped memory for tpu_custom_call.1']
    #allocation5 [shape = 'u8[16384]{0}', space=vmem, size = 0x4000, scoped, tag = 'input window, operand 1, single buffered']
    #allocation6 [shape = 's32[1]{0}', space=sflag, size = 0x4, scoped, tag = 'scoped memory for tpu_custom_call.1']
    #allocation7 [shape = 'u8[8192]{0}', space=vmem, size = 0x2000, scoped, tag = 'output window, operand 0, single buffered']
    %8 = vsyncpa [#allocation3], 0
    %9 = vsyncpa [#allocation6], 0
    %10 = vsyncpa [#allocation4], 0
    // Predicated region
    $region2: #{tpu_custom_call.1} parent=1 // pred_check
      _
    $region3: #{tpu_custom_call.1} parent=1 // pred_check_branch
      %12 = sbr.rel (0) target = $region5
    $region4: #{tpu_custom_call.1} parent=1 // pred_region
      %s14 = ssub.s32 256, 256
      %15 = vsyncadd [#allocation3], %s14
      %s16 = sshll.u32 [#allocation2], 4
      %s17 = int_to_ptr.vmem [resolvable:$true] %s16
      %22 = dma.hbm_to_vmem [thread:$0]  %s0, 256, %s17, [#allocation3], 128, 128, 8
    $region5: #{tpu_custom_call.1} parent=1 // pred_fallthru
      _
    // Predicated region
    $region6: #{tpu_custom_call.1} parent=1 // pred_check
      _
    $region7: #{tpu_custom_call.1} parent=1 // pred_check_branch
      %24 = sbr.rel (0) target = $region9
    $region8: #{tpu_custom_call.1} parent=1 // pred_region
      %s26 = ssub.s32 512, 512
      %27 = vsyncadd [#allocation6], %s26
      %s28 = sshll.u32 [#allocation5], 4
      %s29 = int_to_ptr.vmem [resolvable:$true] %s28
      %34 = dma.hbm_to_vmem [thread:$0]  %s1, 512, %s29, [#allocation6], 128, 128, 8
    $region9: #{tpu_custom_call.1} parent=1 // pred_fallthru
      _
    // Predicated region
    $region10: #{tpu_custom_call.1} parent=1 // pred_check
      _
    $region11: #{tpu_custom_call.1} parent=1 // pred_check_branch
      %36 = sbr.rel (0) target = $region13
    $region12: #{tpu_custom_call.1} parent=1 // pred_region
      _
    $region13: #{tpu_custom_call.1} parent=1 // pred_fallthru
      _
    // Predicated region
    $region14: #{tpu_custom_call.1} parent=1 // pred_check
      _
    $region15: #{tpu_custom_call.1} parent=1 // pred_check_branch
      %38 = sbr.rel (0) target = $region17
    $region16: #{tpu_custom_call.1} parent=1 // pred_region
      %39 = dma.done [#allocation3], 256
    $region17: #{tpu_custom_call.1} parent=1 // pred_fallthru
      _
    // Predicated region
    $region18: #{tpu_custom_call.1} parent=1 // pred_check
      _
    $region19: #{tpu_custom_call.1} parent=1 // pred_check_branch
      %41 = sbr.rel (0) target = $region21
    $region20: #{tpu_custom_call.1} parent=1 // pred_region
      %42 = dma.done [#allocation6], 512
    $region21: #{tpu_custom_call.1} parent=1 // pred_fallthru
      _
    %v43 = vld [vmem:[#allocation2] sm:$0xff]
    %v44 = vld [vmem:[#allocation2 + $0x8] sm:$0xff]
    %v45 = vld [vmem:[#allocation5] sm:$0xff]
    %v46 = vld [vmem:[#allocation5 + $0x8] sm:$0xff]
    %v47 = vld [vmem:[#allocation5 + $0x10] sm:$0xff]
    %v48 = vld [vmem:[#allocation5 + $0x18] sm:$0xff]
    %v49 = vld [vmem:[%s2] sm:$0x1]
    %v51 = vlaneseq
    %v52 = vshrl.u32 %v51, 7
    %v53 = vsub.s32 0, %v52
    %v54 = vrot.slane %v49, %v53
    %vm56 = vcmask 261120
    %v58 = vsel %vm56, %v43, 0
    %v61 = vsel %vm56, %v44, 0
    %63 = vmatprep.subr.mxu0 0.0
    %64 = vmatpush1.msra.mxu0 %v45
    %65 = vmatprep.subr.mxu0 0.0
    %66 = vmatpush1.msra.mxu0 %v46
    %67 = vmatprep.subr.mxu0 0.0
    %68 = vmatpush1.msra.mxu0 %v47
    %69 = vmatprep.subr.mxu0 0.0
    %70 = vmatpush1.msra.mxu0 %v48
    %71 = vmatprep.subr.mxu0 0.0
    %72 = vmatpush1.msra.mxu0 0.0
    %73 = vmatprep.subr.mxu0 0.0
    %74 = vmatpush1.msra.mxu0 0.0
    %75 = vmatprep.subr.mxu0 0.0
    %76 = vmatpush1.msra.mxu0 0.0
    %77 = vmatprep.subr.mxu0 0.0
    %78 = vmatpush1.msra.mxu0 0.0
    %79 = vmatprep.subr.mxu0 0.0
    %80 = vmatpush1.msra.mxu0 0.0
    %81 = vmatprep.subr.mxu0 0.0
    %82 = vmatpush1.msra.mxu0 0.0
    %83 = vmatprep.subr.mxu0 0.0
    %84 = vmatpush1.msra.mxu0 0.0
    %85 = vmatprep.subr.mxu0 0.0
    %86 = vmatpush1.msra.mxu0 0.0
    %87 = vmatprep.subr.mxu0 0.0
    %88 = vmatpush1.msra.mxu0 0.0
    %89 = vmatprep.subr.mxu0 0.0
    %90 = vmatpush1.msra.mxu0 0.0
    %91 = vmatprep.subr.mxu0 0.0
    %92 = vmatpush1.msra.mxu0 0.0
    %93 = vmatprep.subr.mxu0 0.0
    %94 = vmatpush1.msra.mxu0 0.0
    %95 = vmatprep.subr.mxu0 0.0
    %96 = vmatpush1.msra.mxu0 0.0
    %97 = vmatprep.subr.mxu0 0.0
    %98 = vmatpush1.msra.mxu0 0.0
    %99 = vmatprep.subr.mxu0 0.0
    %100 = vmatpush1.msra.mxu0 0.0
    %101 = vmatprep.subr.mxu0 0.0
    %102 = vmatpush1.msra.mxu0 0.0
    %103 = vmatprep.subr.mxu0 0.0
    %104 = vmatpush1.msra.mxu0 0.0
    %105 = vmatprep.subr.mxu0 0.0
    %106 = vmatpush1.msra.mxu0 0.0
    %107 = vmatprep.subr.mxu0 0.0
    %108 = vmatpush1.msra.mxu0 0.0
    %109 = vmatprep.subr.mxu0 0.0
    %110 = vmatpush1.msra.mxu0 0.0
    %111 = vmatprep.subr.mxu0 0.0
    %112 = vmatpush1.msra.mxu0 0.0
    %113 = vmatprep.subr.mxu0 0.0
    %114 = vmatpush1.msra.mxu0 0.0
    %115 = vmatprep.subr.mxu0 0.0
    %116 = vmatpush1.msra.mxu0 0.0
    %117 = vmatprep.subr.mxu0 0.0
    %118 = vmatpush1.msra.mxu0 0.0
    %119 = vmatprep.subr.mxu0 0.0
    %120 = vmatpush1.msra.mxu0 0.0
    %121 = vmatprep.subr.mxu0 0.0
    %122 = vmatpush1.msra.mxu0 0.0
    %123 = vmatprep.subr.mxu0 0.0
    %124 = vmatpush1.msra.mxu0 0.0
    %125 = vmatprep.subr.mxu0 0.0
    %126 = vmatpush1.msra.mxu0 0.0
    %127 = vmatprep.mubr.f32.mxu0 0.0
    %128 = vmatmul.mubr.f32.gmra.mrb[0].mxu0 %v58
    %v129 = vpop.f32.mrb[0].mxu0
    %v130 = vadd.f32 %v54, %v129
    %v131 = vpop.f32.mrb[0].mxu0
    %132 = vmatprep.mubr.f32.mxu0 0.0
    %133 = vmatmul.mubr.f32.gmra.mrb[0].mxu0 %v61
    %v134 = vpop.f32.mrb[0].mxu0
    %v135 = vadd.f32 %v54, %v134
    %v136 = vpop.f32.mrb[0].mxu0
    %137 = vdwg.mxu0
    %138 = vst.msk [vmem:[#allocation7] sm:$0xff] %vm56, %v130
    %139 = vst.msk [vmem:[#allocation7 + $0x8] sm:$0xff] %vm56, %v135
    // Predicated region
    $region22: #{tpu_custom_call.1} parent=1 // pred_check
      _
    $region23: #{tpu_custom_call.1} parent=1 // pred_check_branch
      %141 = sbr.rel (0) target = $region25
    $region24: #{tpu_custom_call.1} parent=1 // pred_region
      %s143 = ssub.s32 256, 256
      %144 = vsyncadd [#allocation4], %s143
      %s145 = sshll.u32 [#allocation7], 4
      %s146 = int_to_ptr.vmem [resolvable:$true] %s145
      %151 = dma.vmem_to_hbm [thread:$0]  %s146, 256, %s3, [#allocation4], 128, 128, 8
    $region25: #{tpu_custom_call.1} parent=1 // pred_fallthru
      _
    // Predicated region
    $region26: #{tpu_custom_call.1} parent=1 // pred_check
      _
    $region27: #{tpu_custom_call.1} parent=1 // pred_check_branch
      %153 = sbr.rel (0) target = $region29
    $region28: #{tpu_custom_call.1} parent=1 // pred_region
      %154 = dma.done [#allocation4], 256
    $region29: #{tpu_custom_call.1} parent=1 // pred_fallthru
      _
    %155 = vsyncpa [#allocation3], 1
    %156 = vsyncpa [#allocation6], 1
    %157 = vsyncpa [#allocation4], 1

</llo_original>
